<compile_context>
chip_gen: v5e
topology: v5e:2x2
jax: 0.10.0
libtpu: 0.0.40
codegen_flags: <defaults>
</compile_context>

<pallas_src>
import functools
import math

import jax
import jax.numpy as jnp
from jax.experimental import pallas as pl
from jax.experimental.pallas import tpu as pltpu


_VMEM_BUDGET_BYTES = 36 * 1024 * 1024      # tile-selection budget (fits v7x's 64 MiB VMEM)
_VMEM_LIMIT_BYTES = 48 * 1024 * 1024       # explicit scoped-VMEM limit (safe on v5e/v6e/v7x)
_H_RESIDENT_MAX_BYTES = 8 * 1024 * 1024    # keep H fully VMEM-resident below this size


def _gcnii_kernel(alpha_ref, a_ref, h_ref, h0_ref, m_ref, out_ref, *,
                  tk, h_resident):
    # alpha_ref: (1,)      f32 SMEM   runtime alpha (no recompile when it changes)
    # a_ref    : (tm, tk)  bf16       A_norm tile
    # h_ref    : (N, Fp)   bf16       VMEM-resident H        (h_resident=True)
    #            (tk, Fp)  bf16       streamed H K-tile      (h_resident=False)
    # h0_ref   : (tm, Fp)  f32        H0 row tile
    # m_ref    : (Fp, Fp)  f32        fused weight M = (1-beta)*I + beta*W.T
    # out_ref  : (tm, Fp)  f32        output block; doubles as the A@H accumulator
    k = pl.program_id(1)

    if h_resident:
        start = pl.multiple_of(k * tk, tk)
        h_blk = h_ref[pl.ds(start, tk), :]
    else:
        h_blk = h_ref[...]

    partial = jnp.dot(a_ref[...], h_blk, preferred_element_type=jnp.float32)

    @pl.when(k == 0)
    def _first():
        out_ref[...] = partial

    @pl.when(k > 0)
    def _accumulate():
        out_ref[...] = out_ref[...] + partial

    @pl.when(k == pl.num_programs(1) - 1)
    def _finalize():
        alpha = alpha_ref[0]
        h1 = (1.0 - alpha) * out_ref[...] + alpha * h0_ref[...]
        out_ref[...] = jnp.dot(h1, m_ref[...], preferred_element_type=jnp.float32)


def _pick_tile(n, cap):
    """Largest multiple of 128 that divides n and is <= cap (>= 128)."""
    cap = min(cap, n)
    cap = max(128, (cap // 128) * 128)
    t = cap
    while n % t != 0:
        t -= 128
    return t


def gcnii_convolution(a_norm, h, h0, weight, lamda, alpha, l, *, tm=None, tk=None):
    """Pallas implementation of GCNIIConvolution.forward.

    a_norm: (N, N) dense normalized adjacency. Pass bf16 to reuse a hoisted cast
            across layers (f32 is accepted and cast internally).
    h, h0 : (N, F) float32
    weight: (F, F) float32, nn.Linear weight layout (out_size, in_size)
    """
    n, f = h.shape
    assert a_norm.shape == (n, n)
    assert h0.shape == (n, f)
    assert weight.shape == (f, f), "GCNII residual requires in_size == out_size"
    assert n % 128 == 0, "N must be a multiple of 128 for this kernel"

    # Fold beta + identity/residual blend into a single matrix (one-time O(F^2)).
    # Changing `l` / `lamda` only changes the data in M, never the compiled kernel.
    beta = math.log(lamda / l + 1.0)
    m = ((1.0 - beta) * jnp.eye(f, dtype=jnp.float32)
         + beta * weight.astype(jnp.float32).T)

    # Lane-dense feature axis: pad F up to a multiple of 128.
    fp = max(128, ((f + 127) // 128) * 128)
    if fp != f:
        h_p = jnp.pad(h, ((0, 0), (0, fp - f)))
        h0_p = jnp.pad(h0, ((0, 0), (0, fp - f)))
        m_p = jnp.pad(m, ((0, fp - f), (0, fp - f)))
    else:
        h_p, h0_p, m_p = h, h0, m

    # bf16 operands for the dominant A @ H matmul; everything else stays f32.
    # The A cast is hoisted: callers should pre-cast A once and reuse it.
    a_bf = a_norm if a_norm.dtype == jnp.bfloat16 else a_norm.astype(jnp.bfloat16)
    h_bf = h_p.astype(jnp.bfloat16)
    h0_f32 = h0_p.astype(jnp.float32)
    m_f32 = m_p.astype(jnp.float32)

    # Keep H fully VMEM-resident (copied once for the whole grid) when it fits.
    h_bytes = n * fp * 2
    h_resident = h_bytes <= _H_RESIDENT_MAX_BYTES

    # ---- VMEM-budgeted tile selection (multiples of 128, divisors of N) ----
    if tm is None:
        tm_cap = 512
        if n >= 256:
            tm_cap = min(tm_cap, n // 2)      # keep >= 2 row blocks for v7x's 2 TCs
        tm = _pick_tile(n, tm_cap)
    if tk is None:
        fixed = 2 * fp * fp * 4               # fused M (2 bufs, conservative)
        fixed += 2 * tm * fp * 4              # H0 (double-buffered)
        fixed += 2 * tm * fp * 4              # output block (double-buffered)
        if h_resident:
            fixed += 2 * h_bytes              # resident H (2 bufs, conservative)
        avail = max(0, _VMEM_BUDGET_BYTES - fixed)
        per_tk = 2 * tm * 2                   # A tile, bf16, double-buffered
        if not h_resident:
            per_tk += 2 * fp * 2              # streamed H K-tile, bf16, double-buffered
        tk_cap = max(128, avail // per_tk)
        tk = _pick_tile(n, min(tk_cap, 8192))
    assert n % tm == 0 and n % tk == 0 and tm % 128 == 0 and tk % 128 == 0

    if h_resident:
        h_spec = pl.BlockSpec((n, fp), lambda i, k: (0, 0))     # pinned, copied once
    else:
        h_spec = pl.BlockSpec((tk, fp), lambda i, k: (k, 0))    # streamed per K step

    alpha_arr = jnp.asarray([alpha], dtype=jnp.float32)

    kernel = functools.partial(_gcnii_kernel, tk=tk, h_resident=h_resident)

    out_p = pl.pallas_call(
        kernel,
        out_shape=jax.ShapeDtypeStruct((n, fp), jnp.float32),
        grid_spec=pltpu.PrefetchScalarGridSpec(
            num_scalar_prefetch=0,
            grid=(n // tm, n // tk),
            in_specs=[
                pl.BlockSpec(memory_space=pltpu.MemorySpace.SMEM),  # alpha scalar
                pl.BlockSpec((tm, tk), lambda i, k: (i, k)),        # A_norm tile
                h_spec,                                             # H
                pl.BlockSpec((tm, fp), lambda i, k: (i, 0)),        # H0 row tile
                pl.BlockSpec((fp, fp), lambda i, k: (0, 0)),        # fused weight M
            ],
            out_specs=pl.BlockSpec((tm, fp), lambda i, k: (i, 0)),
        ),
        compiler_params=pltpu.CompilerParams(
            dimension_semantics=("parallel", "arbitrary"),
            vmem_limit_bytes=_VMEM_LIMIT_BYTES),
    )(alpha_arr, a_bf, h_bf, h0_f32, m_f32)

    out = out_p[:, :f] if fp != f else out_p
    return out.astype(h.dtype) if out.dtype != h.dtype else out


def _reference_f32(a_norm, h, h0, weight, lamda, alpha, l):
    beta = math.log(lamda / l + 1.0)
    ah = a_norm @ h
    h1 = (1.0 - alpha) * ah + alpha * h0
    return (1.0 - beta) * h1 + beta * (h1 @ weight.T)


def _reference_bf16_matched(a_norm, h, h0, weight, lamda, alpha, l):
    # Same math, but the A@H operands rounded to bf16 exactly as the kernel does.
    beta = math.log(lamda / l + 1.0)
    ah = jnp.dot(a_norm.astype(jnp.bfloat16), h.astype(jnp.bfloat16),
                 preferred_element_type=jnp.float32)
    h1 = (1.0 - alpha) * ah + alpha * h0
    return (1.0 - beta) * h1 + beta * (h1 @ weight.T)


if __name__ == "__main__":
    # Small synthetic problem: N nodes, F-dim features (in_size == out_size,
    # as required by the GCNII residual connection).
    N, F = 256, 32
    lamda, alpha, layer = 1.0, 0.1, 3

    key = jax.random.PRNGKey(0)
    k_a, k_h, k_h0, k_w = jax.random.split(key, 4)

    # Deterministic dense "normalized adjacency" (row-softmax so rows sum to 1).
    a_raw = jax.random.normal(k_a, (N, N), dtype=jnp.float32)
    a_norm = jax.nn.softmax(a_raw, axis=-1)

    h = jax.random.normal(k_h, (N, F), dtype=jnp.float32)
    h0 = jax.random.normal(k_h0, (N, F), dtype=jnp.float32)

    # nn.Linear(in_size, out_size, bias=False) weight, shape (out, in).
    bound = 1.0 / math.sqrt(F)
    weight = jax.random.uniform(k_w, (F, F), dtype=jnp.float32,
                                minval=-bound, maxval=bound)

    # Hoisted cast: A is cast to bf16 once and reused for every layer call.
    a_bf16 = a_norm.astype(jnp.bfloat16)

    # Run 1: default budget-derived tiles (VMEM-resident H, single K step here).
    out = gcnii_convolution(a_bf16, h, h0, weight, lamda, alpha, layer)
    out = jax.block_until_ready(out)
    assert out.shape == (N, F)

    # Run 2: forced small tiles to exercise the multi-step K accumulation path
    # (k==0 direct store, k>0 accumulate-into-output, k==last finalize).
    out_small = gcnii_convolution(a_bf16, h, h0, weight, lamda, alpha, layer,
                                  tm=128, tk=128)
    out_small = jax.block_until_ready(out_small)
    assert out_small.shape == (N, F)

    ref_matched = _reference_bf16_matched(a_norm, h, h0, weight, lamda, alpha, layer)
    ref_f32 = _reference_f32(a_norm, h, h0, weight, lamda, alpha, layer)

    for o in (out, out_small):
        # Tight check vs a reference with identically bf16-rounded A@H operands.
        assert jnp.allclose(o, ref_matched, atol=5e-3, rtol=5e-3), \
            "mismatch vs bf16-matched reference"
        # Loose check vs the pure-f32 reference (bf16 matmul operands introduce
        # ~1e-3-level deviation, which is expected).
        assert jnp.allclose(o, ref_f32, atol=5e-2, rtol=5e-2), \
            "mismatch vs f32 reference"

    print("KERNEL_OK")
</pallas_src>

<mosaic_0001>
module attributes {stable_mosaic.version = 11 : i64} {
  func.func @_gcnii_kernel(%arg0: i32, %arg1: i32, %arg2: memref<1xf32, #tpu.memory_space<smem>>, %arg3: memref<128x256xbf16, #tpu.memory_space<vmem>>, %arg4: memref<256x128xbf16, #tpu.memory_space<vmem>>, %arg5: memref<128x128xf32, #tpu.memory_space<vmem>>, %arg6: memref<128x128xf32, #tpu.memory_space<vmem>>, %arg7: memref<128x128xf32, #tpu.memory_space<vmem>>) attributes {dimension_semantics = [#tpu.dimension_semantics<parallel>, #tpu.dimension_semantics<arbitrary>], iteration_bounds = array<i64: 2, 1>, scalar_prefetch = 0 : i64, scratch_operands = 0 : i64, tpu.core_type = #tpu.core_type<tc>, window_params = [{transform_indices = @transform_0, window_bounds = array<i64: 1>}, {transform_indices = @transform_1, window_bounds = array<i64: 128, 256>}, {pipeline_mode = #tpu.pipeline_mode<synchronous>, transform_indices = @transform_2, window_bounds = array<i64: 256, 128>}, {transform_indices = @transform_3, window_bounds = array<i64: 128, 128>}, {pipeline_mode = #tpu.pipeline_mode<synchronous>, transform_indices = @transform_4, window_bounds = array<i64: 128, 128>}, {transform_indices = @transform_5, window_bounds = array<i64: 128, 128>}]} {
    %c256_i32 = arith.constant 256 : i32
    %0 = arith.muli %arg1, %c256_i32 : i32
    %1 = tpu.assume_multiple %0, 256 : i32
    %2 = arith.index_cast %1 : i32 to index
    %c0 = arith.constant 0 : index
    %3 = vector.load %arg4[%2, %c0] : memref<256x128xbf16, #tpu.memory_space<vmem>>, vector<256x128xbf16>
    %c0_0 = arith.constant 0 : index
    %c0_1 = arith.constant 0 : index
    %4 = vector.load %arg3[%c0_0, %c0_1] : memref<128x256xbf16, #tpu.memory_space<vmem>>, vector<128x256xbf16>
    %cst = arith.constant dense<0.000000e+00> : vector<128x128xf32>
    %5 = tpu.matmul %4, %3, %cst {dimension_numbers = #tpu.dot_dimension_numbers<[1], [0], [0], [1], [0, 0, 1, 1], [], []>} : vector<128x256xbf16>, vector<256x128xbf16>, vector<128x128xf32> -> vector<128x128xf32>
    %c0_i32 = arith.constant 0 : i32
    %6 = arith.cmpi eq, %arg1, %c0_i32 : i32
    %7 = arith.extui %6 : i1 to i32
    %c0_i32_2 = arith.constant 0 : i32
    %8 = arith.cmpi ne, %7, %c0_i32_2 : i32
    scf.if %8 {
      %c0_7 = arith.constant 0 : index
      %c0_8 = arith.constant 0 : index
      %15 = vector.load %arg7[%c0_7, %c0_8] : memref<128x128xf32, #tpu.memory_space<vmem>>, vector<128x128xf32>
      tpu.vector_store %arg7[%c0_7, %c0_8], %5 {strides = array<i32>} : memref<128x128xf32, #tpu.memory_space<vmem>>, vector<128x128xf32>,
    } else {
    }
    %c0_i32_3 = arith.constant 0 : i32
    %9 = arith.cmpi sgt, %arg1, %c0_i32_3 : i32
    %10 = arith.extui %9 : i1 to i32
    %c0_i32_4 = arith.constant 0 : i32
    %11 = arith.cmpi ne, %10, %c0_i32_4 : i32
    scf.if %11 {
      %c0_7 = arith.constant 0 : index
      %c0_8 = arith.constant 0 : index
      %15 = vector.load %arg7[%c0_7, %c0_8] : memref<128x128xf32, #tpu.memory_space<vmem>>, vector<128x128xf32>
      %16 = arith.addf %15, %5 : vector<128x128xf32>
      %c0_9 = arith.constant 0 : index
      %c0_10 = arith.constant 0 : index
      %17 = vector.load %arg7[%c0_9, %c0_10] : memref<128x128xf32, #tpu.memory_space<vmem>>, vector<128x128xf32>
      tpu.vector_store %arg7[%c0_9, %c0_10], %16 {strides = array<i32>} : memref<128x128xf32, #tpu.memory_space<vmem>>, vector<128x128xf32>,
    } else {
    }
    %c0_i32_5 = arith.constant 0 : i32
    %12 = arith.cmpi eq, %arg1, %c0_i32_5 : i32
    %13 = arith.extui %12 : i1 to i32
    %c0_i32_6 = arith.constant 0 : i32
    %14 = arith.cmpi ne, %13, %c0_i32_6 : i32
    scf.if %14 {
      %c0_7 = arith.constant 0 : index
      %15 = memref.load %arg2[%c0_7] : memref<1xf32, #tpu.memory_space<smem>>
      %cst_8 = arith.constant 1.000000e+00 : f32
      %16 = arith.subf %cst_8, %15 : f32
      %c0_9 = arith.constant 0 : index
      %c0_10 = arith.constant 0 : index
      %17 = vector.load %arg7[%c0_9, %c0_10] : memref<128x128xf32, #tpu.memory_space<vmem>>, vector<128x128xf32>
      %18 = vector.broadcast %16 : f32 to vector<128x128xf32>
      %19 = arith.mulf %18, %17 : vector<128x128xf32>
      %c0_11 = arith.constant 0 : index
      %c0_12 = arith.constant 0 : index
      %20 = vector.load %arg5[%c0_11, %c0_12] : memref<128x128xf32, #tpu.memory_space<vmem>>, vector<128x128xf32>
      %21 = vector.broadcast %15 : f32 to vector<128x128xf32>
      %22 = arith.mulf %21, %20 : vector<128x128xf32>
      %23 = arith.addf %19, %22 : vector<128x128xf32>
      %c0_13 = arith.constant 0 : index
      %c0_14 = arith.constant 0 : index
      %24 = vector.load %arg6[%c0_13, %c0_14] : memref<128x128xf32, #tpu.memory_space<vmem>>, vector<128x128xf32>
      %cst_15 = arith.constant dense<0.000000e+00> : vector<128x128xf32>
      %25 = tpu.matmul %23, %24, %cst_15 {dimension_numbers = #tpu.dot_dimension_numbers<[1], [0], [0], [1], [0, 0, 1, 1], [], []>} : vector<128x128xf32>, vector<128x128xf32>, vector<128x128xf32> -> vector<128x128xf32>
      %c0_16 = arith.constant 0 : index
      %c0_17 = arith.constant 0 : index
      %26 = vector.load %arg7[%c0_16, %c0_17] : memref<128x128xf32, #tpu.memory_space<vmem>>, vector<128x128xf32>
      tpu.vector_store %arg7[%c0_16, %c0_17], %25 {strides = array<i32>} : memref<128x128xf32, #tpu.memory_space<vmem>>, vector<128x128xf32>,
    } else {
    }
    return
  }
  func.func @transform_0(%arg0: i32, %arg1: i32) -> i32 {
    %c0_i32 = arith.constant 0 : i32
    %c0_i32_0 = arith.constant 0 : i32
    return %c0_i32 : i32
  }
  func.func @transform_1(%arg0: i32, %arg1: i32) -> (i32, i32) {
    %c0_i32 = arith.constant 0 : i32
    return %arg0, %arg1 : i32, i32
  }
  func.func @transform_2(%arg0: i32, %arg1: i32) -> (i32, i32) {
    %c0_i32 = arith.constant 0 : i32
    %c0_i32_0 = arith.constant 0 : i32
    %c0_i32_1 = arith.constant 0 : i32
    return %c0_i32, %c0_i32_0 : i32, i32
  }
  func.func @transform_3(%arg0: i32, %arg1: i32) -> (i32, i32) {
    %c0_i32 = arith.constant 0 : i32
    %c0_i32_0 = arith.constant 0 : i32
    return %arg0, %c0_i32 : i32, i32
  }
  func.func @transform_4(%arg0: i32, %arg1: i32) -> (i32, i32) {
    %c0_i32 = arith.constant 0 : i32
    %c0_i32_0 = arith.constant 0 : i32
    %c0_i32_1 = arith.constant 0 : i32
    return %c0_i32, %c0_i32_0 : i32, i32
  }
  func.func @transform_5(%arg0: i32, %arg1: i32) -> (i32, i32) {
    %c0_i32 = arith.constant 0 : i32
    %c0_i32_0 = arith.constant 0 : i32
    return %arg0, %c0_i32 : i32, i32
  }
}

</mosaic_0001>

<llo_original>
// kernel: tpu_custom_call.1
$region0: #{tpu_custom_call.1}
  #allocation0 [shape = 'u32[]', space=smem, size = 0x4, offset = 0x4, fixed_abs, tag = 'smem constant byte address 0x4 - core index']
  #allocation1 [shape = 'u32[72,128]{1,0:T(1,128)}', space=vmem, size = 0x9000, scoped, tag = 'internal scratch']
  #allocation2 [shape = 'f32[1]{0:T(128)S(6)}', space=smem, size = 0x200, scoped, tag = 'scoped memory for tpu_custom_call.1']
  %s0 = inlined_call_operand.<no memory space> [shape: f32[1], index: 0, kind: input, shape index: {}]
  %s1 = inlined_call_operand.hbm [shape: bf16[256,256], index: 1, kind: input, shape index: {}]
  %s2 = inlined_call_operand.hbm [shape: bf16[256,128], index: 2, kind: input, shape index: {}]
  %s3 = inlined_call_operand.hbm [shape: f32[256,128], index: 3, kind: input, shape index: {}]
  %s4 = inlined_call_operand.hbm [shape: f32[128,128], index: 4, kind: input, shape index: {}]
  %s5 = inlined_call_operand.hbm [shape: f32[256,128], index: 5, kind: output, shape index: {}]
  %s6 = sld [smem:[#allocation0]]
  $region81: #{tpu_custom_call.1} parent=0
    _
  %s8 = ssub.s32 1, %s6
  %s9 = scalar_select 0, %s8, %s6
  %10 = sst [smem:[#allocation2]] %s0
  $region1: #{tpu_custom_call.1} parent=0
    #allocation3 [shape = 'u8[131072]{0}', space=vmem, size = 0x20000, scoped, tag = 'input window, operand 1']
    #allocation4 [shape = 's32[2]{0}', space=sflag, size = 0x8, scoped, tag = 'scoped memory for tpu_custom_call.1']
    #allocation5 [shape = 's32[2]{0}', space=sflag, size = 0x8, scoped, tag = 'scoped memory for tpu_custom_call.1']
    #allocation6 [shape = 'u8[65536]{0}', space=vmem, size = 0x10000, scoped, tag = 'input window, operand 2, single buffered']
    #allocation7 [shape = 's32[1]{0}', space=sflag, size = 0x4, scoped, tag = 'scoped memory for tpu_custom_call.1']
    #allocation8 [shape = 'u8[131072]{0}', space=vmem, size = 0x20000, scoped, tag = 'input window, operand 3']
    #allocation9 [shape = 'u8[65536]{0}', space=vmem, size = 0x10000, scoped, tag = 'input window, operand 4, single buffered']
    #allocation10 [shape = 'u8[131072]{0}', space=vmem, size = 0x20000, scoped, tag = 'output window, operand 0']
    %11 = vsyncpa [#allocation4], 0
    %s12 = scalar_lea.sflag [#allocation4], 1
    %13 = vsyncpa %s12, 0
    %14 = vsyncpa [#allocation7], 0
    %15 = vsyncpa [#allocation5], 0
    %s16 = scalar_lea.sflag [#allocation5], 1
    %17 = vsyncpa %s16, 0
    loop: start=0, step=1, limit=4
    $region2: #{tpu_custom_call.1} parent=1 // loop_pre_header
      _
    $region3: #{tpu_custom_call.1} parent=1 // loop_header
      %s19 = sphi 0, %s23
      %p20 = scmp.ge.s32.totalorder %s19, 4
      %s26 = sphi 0, %s38
      %s27 = sphi 0, %s34
      %s28 = sphi 0, %s26
      %s29 = sphi 0, %s27
      %s30 = sphi 0, %s28
      %s31 = sphi 0, %s29
      %s39 = sphi 0, %s39
      %s41 = sphi 0, %s39
      %s42 = sphi 0, %s41
      %s56 = sphi 0, %s42
      %s64 = sphi 0, %s66
      %s67 = sphi 0, %s64
      %s68 = sphi 0, %s67
      %s84 = sphi 0, %s68
      %s88 = sphi 0, %s88
      %s90 = sphi 0, %s88
      %s91 = sphi 0, %s90
      %s105 = sphi 0, %s91
      %s111 = sphi 0, %s113
      %s114 = sphi 0, %s111
      %s115 = sphi 0, %s114
      %s131 = sphi 0, %s115
      %s135 = sphi 0, %s135
      %s137 = sphi 0, %s135
      %s138 = sphi 0, %s137
      %s152 = sphi 0, %s138
      %s158 = sphi 0, %s160
      %s161 = sphi 0, %s158
      %s162 = sphi 0, %s161
      %s178 = sphi 0, %s162
    $region4: #{tpu_custom_call.1} parent=1 // loop_header_branch
      %22 = sbr.rel (%p20) target = $region8
    $region5: #{tpu_custom_call.1} parent=1 // loop_body
      %s24 = ssub.s32 %s19, 1
      %s25 = ssub.s32 %s19, 2
      %s32 = sadd.s32 1, %s27
      %p33 = scmp.ge.s32.totalorder %s32, 1
      %s34 = scalar_select %p33, 0, %s32
      %s35 = sadd.s32 1, %s26
      %s36 = scalar_select %p33, %s35, %s26
      %p37 = scmp.ge.s32.totalorder %s36, 2
      %s38 = scalar_select %p37, 0, %s36
      %s40 = sadd.s32 %s39, 1
      %p43 = scmp.eq.s32.totalorder %s19, 1
      %p44 = scmp.ne.s32.totalorder %s39, %s41
      %p45 = scmp.eq.s32.totalorder %s19, 0
      %p46 = por %p44, %p45
      %p47 = scmp.ne.s32.totalorder %s39, %s41
      %p48 = scmp.eq.s32.totalorder %s24, 1
      %p49 = por %p47, %p48
      %p50 = scmp.ne.s32.totalorder %s41, %s42
      %p51 = scmp.eq.s32.totalorder %s24, 0
      %p52 = por %p50, %p51
      %p53 = scmp.ne.s32.totalorder %s41, %s42
      %p54 = scmp.eq.s32.totalorder %s25, 1
      %p55 = por %p53, %p54
      %p57 = scmp.ne.s32.totalorder %s42, %s56
      %p58 = scmp.eq.s32.totalorder %s25, 0
      %p59 = por %p57, %p58
      %s60 = ssub.s32 %s26, %s38
      %s61 = ssub.s32 %s27, %s34
      %s62 = sor.u32 %s60, %s61
      %p63 = scmp.eq.s32.totalorder %s62, 0
      %s65 = sadd.s32 %s64, 1
      %s66 = scalar_select %p63, %s64, %s65
      %p69 = pneg %p63
      %p70 = scmp.eq.s32.totalorder %s19, 1
      %p71 = por %p69, %p70
      %p72 = scmp.ne.s32.totalorder %s64, %s67
      %p73 = scmp.eq.s32.totalorder %s19, 0
      %p74 = por %p72, %p73
      %p75 = scmp.ne.s32.totalorder %s64, %s67
      %p76 = scmp.eq.s32.totalorder %s24, 1
      %p77 = por %p75, %p76
      %p78 = scmp.ne.s32.totalorder %s67, %s68
      %p79 = scmp.eq.s32.totalorder %s24, 0
      %p80 = por %p78, %p79
      %p81 = scmp.ne.s32.totalorder %s67, %s68
      %p82 = scmp.eq.s32.totalorder %s25, 1
      %p83 = por %p81, %p82
      %p85 = scmp.ne.s32.totalorder %s68, %s84
      %p86 = scmp.eq.s32.totalorder %s25, 0
      %p87 = por %p85, %p86
      %s89 = sadd.s32 %s88, 1
      %p92 = scmp.eq.s32.totalorder %s19, 1
      %p93 = scmp.ne.s32.totalorder %s88, %s90
      %p94 = scmp.eq.s32.totalorder %s19, 0
      %p95 = por %p93, %p94
      %p96 = scmp.ne.s32.totalorder %s88, %s90
      %p97 = scmp.eq.s32.totalorder %s24, 1
      %p98 = por %p96, %p97
      %p99 = scmp.ne.s32.totalorder %s90, %s91
      %p100 = scmp.eq.s32.totalorder %s24, 0
      %p101 = por %p99, %p100
      %p102 = scmp.ne.s32.totalorder %s90, %s91
      %p103 = scmp.eq.s32.totalorder %s25, 1
      %p104 = por %p102, %p103
      %p106 = scmp.ne.s32.totalorder %s91, %s105
      %p107 = scmp.eq.s32.totalorder %s25, 0
      %p108 = por %p106, %p107
      %s109 = ssub.s32 %s26, %s38
      %p110 = scmp.eq.s32.totalorder %s109, 0
      %s112 = sadd.s32 %s111, 1
      %s113 = scalar_select %p110, %s111, %s112
      %p116 = pneg %p110
      %p117 = scmp.eq.s32.totalorder %s19, 1
      %p118 = por %p116, %p117
      %p119 = scmp.ne.s32.totalorder %s111, %s114
      %p120 = scmp.eq.s32.totalorder %s19, 0
      %p121 = por %p119, %p120
      %p122 = scmp.ne.s32.totalorder %s111, %s114
      %p123 = scmp.eq.s32.totalorder %s24, 1
      %p124 = por %p122, %p123
      %p125 = scmp.ne.s32.totalorder %s114, %s115
      %p126 = scmp.eq.s32.totalorder %s24, 0
      %p127 = por %p125, %p126
      %p128 = scmp.ne.s32.totalorder %s114, %s115
      %p129 = scmp.eq.s32.totalorder %s25, 1
      %p130 = por %p128, %p129
      %p132 = scmp.ne.s32.totalorder %s115, %s131
      %p133 = scmp.eq.s32.totalorder %s25, 0
      %p134 = por %p132, %p133
      %s136 = sadd.s32 %s135, 1
      %p139 = scmp.eq.s32.totalorder %s19, 1
      %p140 = scmp.ne.s32.totalorder %s135, %s137
      %p141 = scmp.eq.s32.totalorder %s19, 0
      %p142 = por %p140, %p141
      %p143 = scmp.ne.s32.totalorder %s135, %s137
      %p144 = scmp.eq.s32.totalorder %s24, 1
      %p145 = por %p143, %p144
      %p146 = scmp.ne.s32.totalorder %s137, %s138
      %p147 = scmp.eq.s32.totalorder %s24, 0
      %p148 = por %p146, %p147
      %p149 = scmp.ne.s32.totalorder %s137, %s138
      %p150 = scmp.eq.s32.totalorder %s25, 1
      %p151 = por %p149, %p150
      %p153 = scmp.ne.s32.totalorder %s138, %s152
      %p154 = scmp.eq.s32.totalorder %s25, 0
      %p155 = por %p153, %p154
      %s156 = ssub.s32 %s26, %s38
      %p157 = scmp.eq.s32.totalorder %s156, 0
      %s159 = sadd.s32 %s158, 1
      %s160 = scalar_select %p157, %s158, %s159
      %p163 = pneg %p157
      %p164 = scmp.eq.s32.totalorder %s19, 1
      %p165 = por %p163, %p164
      %p166 = scmp.ne.s32.totalorder %s158, %s161
      %p167 = scmp.eq.s32.totalorder %s19, 0
      %p168 = por %p166, %p167
      %p169 = scmp.ne.s32.totalorder %s158, %s161
      %p170 = scmp.eq.s32.totalorder %s24, 1
      %p171 = por %p169, %p170
      %p172 = scmp.ne.s32.totalorder %s161, %s162
      %p173 = scmp.eq.s32.totalorder %s24, 0
      %p174 = por %p172, %p173
      %p175 = scmp.ne.s32.totalorder %s161, %s162
      %p176 = scmp.eq.s32.totalorder %s25, 1
      %p177 = por %p175, %p176
      %p179 = scmp.ne.s32.totalorder %s162, %s178
      %p180 = scmp.eq.s32.totalorder %s25, 0
      %p181 = por %p179, %p180
      %p182 = scmp.le.s32.totalorder 1, %s19
      %p183 = scmp.lt.s32.totalorder %s19, 3
      %p184 = pnand %p182, %p183
      %p185 = pneg %p184
      // Predicated region
      $region9: #{tpu_custom_call.1} parent=5 // pred_check
        _
      $region10: #{tpu_custom_call.1} parent=5 // pred_check_branch
        %187 = sbr.rel (%p184) target = $region12
      $region11: #{tpu_custom_call.1} parent=5 // pred_region
        %s188 = ssub.s32 %s19, 1
        // Predicated region
        $region13: #{tpu_custom_call.1} parent=11 // pred_check
          %p189 = pneg %p52
        $region14: #{tpu_custom_call.1} parent=11 // pred_check_branch
          %191 = sbr.rel (%p189) target = $region16
        $region15: #{tpu_custom_call.1} parent=11 // pred_region
          _
        $region16: #{tpu_custom_call.1} parent=11 // pred_fallthru
          _
        // Predicated region
        $region17: #{tpu_custom_call.1} parent=11 // pred_check
          %p192 = pneg %p101
        $region18: #{tpu_custom_call.1} parent=11 // pred_check_branch
          %194 = sbr.rel (%p192) target = $region20
        $region19: #{tpu_custom_call.1} parent=11 // pred_region
          %196 = vsyncadd [#allocation7], 0
          %s197 = sshll.u32 %s2, 4
          %s198 = int_to_ptr.hbm [resolvable:$true] %s197
          %s199 = sshll.u32 [#allocation6], 4
          %s200 = int_to_ptr.vmem [resolvable:$true] %s199
          %205 = dma.hbm_to_vmem [thread:$0]  %s198, 2048, %s200, [#allocation7], 64, 64, 4
        $region20: #{tpu_custom_call.1} parent=11 // pred_fallthru
          _
        // Predicated region
        $region21: #{tpu_custom_call.1} parent=11 // pred_check
          %p206 = pneg %p148
        $region22: #{tpu_custom_call.1} parent=11 // pred_check_branch
          %208 = sbr.rel (%p206) target = $region24
        $region23: #{tpu_custom_call.1} parent=11 // pred_region
          %210 = vsyncadd [#allocation7], 0
          %s211 = sshll.u32 %s4, 4
          %s212 = int_to_ptr.hbm [resolvable:$true] %s211
          %s213 = sshll.u32 [#allocation9], 4
          %s214 = int_to_ptr.vmem [resolvable:$true] %s213
          %219 = dma.hbm_to_vmem [thread:$0]  %s212, 2048, %s214, [#allocation7], 128, 128, 8
        $region24: #{tpu_custom_call.1} parent=11 // pred_fallthru
          _
      $region12: #{tpu_custom_call.1} parent=5 // pred_fallthru
        _
      %p220 = scmp.lt.s32.totalorder %s19, 2
      // Predicated region
      $region25: #{tpu_custom_call.1} parent=5 // pred_check
        %p221 = pneg %p220
      $region26: #{tpu_custom_call.1} parent=5 // pred_check_branch
        %223 = sbr.rel (%p221) target = $region28
      $region27: #{tpu_custom_call.1} parent=5 // pred_region
        // Predicated region
        $region29: #{tpu_custom_call.1} parent=27 // pred_check
          %p224 = pneg %p74
        $region30: #{tpu_custom_call.1} parent=27 // pred_check_branch
          %226 = sbr.rel (%p224) target = $region32
        $region31: #{tpu_custom_call.1} parent=27 // pred_region
          %s227 = sand.u32 %s19, 1
          %s228 = scalar_lea.sflag [#allocation4], %s227
          %s229 = sand.u32 %s64, 1
          %s230 = smul.addr %s229, 128
          %s231 = scalar_lea.vmem [#allocation3], %s230
          %s232 = smul.u32 16, %s26
          %s233 = smul.u32 2, %s27
          %235 = vsyncadd %s228, 0
          %s236 = smul.addr %s232, 2
          %s237 = sadd.s32 %s233, %s236
          %s238 = smul.addr %s237, 4
          %s239 = scalar_lea.hbm %s1, %s238
          %s240 = sshll.u32 %s239, 4
          %s241 = int_to_ptr.hbm [resolvable:$true] %s240
          %s242 = sshll.u32 %s231, 4
          %s243 = int_to_ptr.vmem [resolvable:$true] %s242
          %248 = dma.hbm_to_vmem [thread:$0]  %s241, 2048, %s243, %s228, 128, 128, 8
        $region32: #{tpu_custom_call.1} parent=27 // pred_fallthru
          _
        // Predicated region
        $region33: #{tpu_custom_call.1} parent=27 // pred_check
          %p249 = pneg %p121
        $region34: #{tpu_custom_call.1} parent=27 // pred_check_branch
          %251 = sbr.rel (%p249) target = $region36
        $region35: #{tpu_custom_call.1} parent=27 // pred_region
          %s252 = sand.u32 %s19, 1
          %s253 = scalar_lea.sflag [#allocation4], %s252
          %s254 = sand.u32 %s111, 1
          %s255 = smul.addr %s254, 128
          %s256 = scalar_lea.vmem [#allocation8], %s255
          %s257 = smul.u32 16, %s26
          %259 = vsyncadd %s253, 0
          %s260 = smul.addr %s257, 8
          %s261 = scalar_lea.hbm %s3, %s260
          %s262 = sshll.u32 %s261, 4
          %s263 = int_to_ptr.hbm [resolvable:$true] %s262
          %s264 = sshll.u32 %s256, 4
          %s265 = int_to_ptr.vmem [resolvable:$true] %s264
          %270 = dma.hbm_to_vmem [thread:$0]  %s263, 2048, %s265, %s253, 128, 128, 8
        $region36: #{tpu_custom_call.1} parent=27 // pred_fallthru
          _
      $region28: #{tpu_custom_call.1} parent=5 // pred_fallthru
        _
      %p271 = scmp.le.s32.totalorder 1, %s19
      %p272 = scmp.lt.s32.totalorder %s19, 3
      %p273 = pnand %p271, %p272
      %p274 = pneg %p273
      // Predicated region
      $region37: #{tpu_custom_call.1} parent=5 // pred_check
        _
      $region38: #{tpu_custom_call.1} parent=5 // pred_check_branch
        %276 = sbr.rel (%p273) target = $region40
      $region39: #{tpu_custom_call.1} parent=5 // pred_region
        %s277 = ssub.s32 %s19, 1
        %s278 = sand.u32 %s24, 1
        %s279 = scalar_lea.sflag [#allocation4], %s278
        %s280 = sand.u32 %s67, 1
        %s281 = smul.addr %s280, 128
        %s282 = scalar_lea.vmem [#allocation3], %s281
        // Predicated region
        $region41: #{tpu_custom_call.1} parent=39 // pred_check
          %p283 = pneg %p80
        $region42: #{tpu_custom_call.1} parent=39 // pred_check_branch
          %285 = sbr.rel (%p283) target = $region44
        $region43: #{tpu_custom_call.1} parent=39 // pred_region
          %287 = dma.done %s279, 2048
        $region44: #{tpu_custom_call.1} parent=39 // pred_fallthru
          _
        // Predicated region
        $region45: #{tpu_custom_call.1} parent=39 // pred_check
          %p288 = pneg %p101
        $region46: #{tpu_custom_call.1} parent=39 // pred_check_branch
          %290 = sbr.rel (%p288) target = $region48
        $region47: #{tpu_custom_call.1} parent=39 // pred_region
          %292 = dma.done [#allocation7], 2048
        $region48: #{tpu_custom_call.1} parent=39 // pred_fallthru
          _
        %s293 = sand.u32 %s24, 1
        %s294 = scalar_lea.sflag [#allocation4], %s293
        %s295 = sand.u32 %s114, 1
        %s296 = smul.addr %s295, 128
        %s297 = scalar_lea.vmem [#allocation8], %s296
        // Predicated region
        $region49: #{tpu_custom_call.1} parent=39 // pred_check
          %p298 = pneg %p127
        $region50: #{tpu_custom_call.1} parent=39 // pred_check_branch
          %300 = sbr.rel (%p298) target = $region52
        $region51: #{tpu_custom_call.1} parent=39 // pred_region
          %302 = dma.done %s294, 2048
        $region52: #{tpu_custom_call.1} parent=39 // pred_fallthru
          _
        // Predicated region
        $region53: #{tpu_custom_call.1} parent=39 // pred_check
          %p303 = pneg %p148
        $region54: #{tpu_custom_call.1} parent=39 // pred_check_branch
          %305 = sbr.rel (%p303) target = $region56
        $region55: #{tpu_custom_call.1} parent=39 // pred_region
          %307 = dma.done [#allocation7], 2048
        $region56: #{tpu_custom_call.1} parent=39 // pred_fallthru
          _
        %p308 = pneg %p52
        %p309 = pneg %p49
        %s310 = sand.u32 %s24, 1
        %s311 = scalar_lea.sflag [#allocation4], %s310
        %s312 = sand.u32 %s67, 1
        %s313 = smul.addr %s312, 128
        %s314 = scalar_lea.vmem [#allocation3], %s313
        %p315 = pneg %p80
        %p316 = pneg %p77
        %p317 = pneg %p101
        %p318 = pneg %p98
        %s319 = sand.u32 %s24, 1
        %s320 = scalar_lea.sflag [#allocation4], %s319
        %s321 = sand.u32 %s114, 1
        %s322 = smul.addr %s321, 128
        %s323 = scalar_lea.vmem [#allocation8], %s322
        %p324 = pneg %p127
        %p325 = pneg %p124
        %p326 = pneg %p148
        %p327 = pneg %p145
        %p328 = pneg %p174
        %p329 = pneg %p171
        %s330 = sand.u32 %s161, 1
        %s331 = scalar_lea.sflag [#allocation5], %s330
        %s332 = sand.u32 %s161, 1
        %s333 = smul.addr %s332, 128
        %s334 = scalar_lea.vmem [#allocation10], %s333
        %s335 = smul.u32 16, %s28
        %s336 = smul.u32 2, %s29
        %s337 = smul.u32 16, %s28
        %s338 = smul.u32 16, %s28
        %s339 = smul.u32 %s29, 256
        %s340 = sshra.s32 %s339, 3
        %s341 = sand.u32 %s339, 7
        %s342 = smul.addr %s340, 4
        %s343 = scalar_lea.vmem [#allocation6], %s342
        %v344 = vld [vmem:[%s343] sm:$0xf]
        %v345 = vld [vmem:[%s343 + $0x4] sm:$0xf]
        %v346 = vld [vmem:[%s343 + $0x8] sm:$0xf]
        %v347 = vld [vmem:[%s343 + $0xc] sm:$0xf]
        %v348 = vld [vmem:[%s343 + $0x10] sm:$0xf]
        %v349 = vld [vmem:[%s343 + $0x14] sm:$0xf]
        %v350 = vld [vmem:[%s343 + $0x18] sm:$0xf]
        %v351 = vld [vmem:[%s343 + $0x1c] sm:$0xf]
        %v352 = vld [vmem:[%s343 + $0x20] sm:$0xf]
        %v353 = vld [vmem:[%s343 + $0x24] sm:$0xf]
        %v354 = vld [vmem:[%s343 + $0x28] sm:$0xf]
        %v355 = vld [vmem:[%s343 + $0x2c] sm:$0xf]
        %v356 = vld [vmem:[%s343 + $0x30] sm:$0xf]
        %v357 = vld [vmem:[%s343 + $0x34] sm:$0xf]
        %v358 = vld [vmem:[%s343 + $0x38] sm:$0xf]
        %v359 = vld [vmem:[%s343 + $0x3c] sm:$0xf]
        %v360 = vld [vmem:[%s343 + $0x40] sm:$0xf]
        %v361 = vld [vmem:[%s343 + $0x44] sm:$0xf]
        %v362 = vld [vmem:[%s343 + $0x48] sm:$0xf]
        %v363 = vld [vmem:[%s343 + $0x4c] sm:$0xf]
        %v364 = vld [vmem:[%s343 + $0x50] sm:$0xf]
        %v365 = vld [vmem:[%s343 + $0x54] sm:$0xf]
        %v366 = vld [vmem:[%s343 + $0x58] sm:$0xf]
        %v367 = vld [vmem:[%s343 + $0x5c] sm:$0xf]
        %v368 = vld [vmem:[%s343 + $0x60] sm:$0xf]
        %v369 = vld [vmem:[%s343 + $0x64] sm:$0xf]
        %v370 = vld [vmem:[%s343 + $0x68] sm:$0xf]
        %v371 = vld [vmem:[%s343 + $0x6c] sm:$0xf]
        %v372 = vld [vmem:[%s343 + $0x70] sm:$0xf]
        %v373 = vld [vmem:[%s343 + $0x74] sm:$0xf]
        %v374 = vld [vmem:[%s343 + $0x78] sm:$0xf]
        %v375 = vld [vmem:[%s343 + $0x7c] sm:$0xf]
        %v376 = vld [vmem:[%s282] sm:$0xff]
        %v377 = vld [vmem:[%s282 + $0x8] sm:$0xff]
        %v378 = vld [vmem:[%s282 + $0x10] sm:$0xff]
        %v379 = vld [vmem:[%s282 + $0x18] sm:$0xff]
        %v380 = vld [vmem:[%s282 + $0x20] sm:$0xff]
        %v381 = vld [vmem:[%s282 + $0x28] sm:$0xff]
        %v382 = vld [vmem:[%s282 + $0x30] sm:$0xff]
        %v383 = vld [vmem:[%s282 + $0x38] sm:$0xff]
        %v384 = vld [vmem:[%s282 + $0x40] sm:$0xff]
        %v385 = vld [vmem:[%s282 + $0x48] sm:$0xff]
        %v386 = vld [vmem:[%s282 + $0x50] sm:$0xff]
        %v387 = vld [vmem:[%s282 + $0x58] sm:$0xff]
        %v388 = vld [vmem:[%s282 + $0x60] sm:$0xff]
        %v389 = vld [vmem:[%s282 + $0x68] sm:$0xff]
        %v390 = vld [vmem:[%s282 + $0x70] sm:$0xff]
        %v391 = vld [vmem:[%s282 + $0x78] sm:$0xff]
        %v408 = vunpack.c.l.b16 %v376
        %v409 = vunpack.c.h.b16 %v376
        %v410 = vunpack.c.l.b16 %v377
        %v411 = vunpack.c.h.b16 %v377
        %v412 = vunpack.c.l.b16 %v378
        %v413 = vunpack.c.h.b16 %v378
        %v414 = vunpack.c.l.b16 %v379
        %v415 = vunpack.c.h.b16 %v379
        %v416 = vunpack.c.l.b16 %v380
        %v417 = vunpack.c.h.b16 %v380
        %v418 = vunpack.c.l.b16 %v381
        %v419 = vunpack.c.h.b16 %v381
        %v420 = vunpack.c.l.b16 %v382
        %v421 = vunpack.c.h.b16 %v382
        %v422 = vunpack.c.l.b16 %v383
        %v423 = vunpack.c.h.b16 %v383
        %v424 = vunpack.c.l.b16 %v384
        %v425 = vunpack.c.h.b16 %v384
        %v426 = vunpack.c.l.b16 %v385
        %v427 = vunpack.c.h.b16 %v385
        %v428 = vunpack.c.l.b16 %v386
        %v429 = vunpack.c.h.b16 %v386
        %v430 = vunpack.c.l.b16 %v387
        %v431 = vunpack.c.h.b16 %v387
        %v432 = vunpack.c.l.b16 %v388
        %v433 = vunpack.c.h.b16 %v388
        %v434 = vunpack.c.l.b16 %v389
        %v435 = vunpack.c.h.b16 %v389
        %v436 = vunpack.c.l.b16 %v390
        %v437 = vunpack.c.h.b16 %v390
        %v438 = vunpack.c.l.b16 %v391
        %v439 = vunpack.c.h.b16 %v391
        %v440 = vpack.c.b16 %v410, %v408
        %v441 = vpack.c.b16 %v411, %v409
        %v442 = vpack.c.b16 %v414, %v412
        %v443 = vpack.c.b16 %v415, %v413
        %v444 = vpack.c.b16 %v418, %v416
        %v445 = vpack.c.b16 %v419, %v417
        %v446 = vpack.c.b16 %v422, %v420
        %v447 = vpack.c.b16 %v423, %v421
        %v448 = vpack.c.b16 %v426, %v424
        %v449 = vpack.c.b16 %v427, %v425
        %v450 = vpack.c.b16 %v430, %v428
        %v451 = vpack.c.b16 %v431, %v429
        %v452 = vpack.c.b16 %v434, %v432
        %v453 = vpack.c.b16 %v435, %v433
        %v454 = vpack.c.b16 %v438, %v436
        %v455 = vpack.c.b16 %v439, %v437
        %v504 = vunpack.c.l.b16 %v344
        %v505 = vunpack.c.l.b16 %v345
        %v506 = vunpack.c.l.b16 %v346
        %v507 = vunpack.c.l.b16 %v347
        %v508 = vunpack.c.l.b16 %v348
        %v509 = vunpack.c.l.b16 %v349
        %v510 = vunpack.c.l.b16 %v350
        %v511 = vunpack.c.l.b16 %v351
        %v512 = vunpack.c.l.b16 %v352
        %v513 = vunpack.c.l.b16 %v353
        %v514 = vunpack.c.l.b16 %v354
        %v515 = vunpack.c.l.b16 %v355
        %v516 = vunpack.c.l.b16 %v356
        %v517 = vunpack.c.l.b16 %v357
        %v518 = vunpack.c.l.b16 %v358
        %v519 = vunpack.c.l.b16 %v359
        %v520 = vunpack.c.l.b16 %v360
        %v521 = vunpack.c.l.b16 %v361
        %v522 = vunpack.c.l.b16 %v362
        %v523 = vunpack.c.l.b16 %v363
        %v524 = vunpack.c.l.b16 %v364
        %v525 = vunpack.c.l.b16 %v365
        %v526 = vunpack.c.l.b16 %v366
        %v527 = vunpack.c.l.b16 %v367
        %v528 = vunpack.c.l.b16 %v368
        %v529 = vunpack.c.l.b16 %v369
        %v530 = vunpack.c.l.b16 %v370
        %v531 = vunpack.c.l.b16 %v371
        %v532 = vunpack.c.l.b16 %v372
        %v533 = vunpack.c.l.b16 %v373
        %v534 = vunpack.c.l.b16 %v374
        %v535 = vunpack.c.l.b16 %v375
        %v536 = vpack.c.b16 %v505, %v504
        %v537 = vpack.c.b16 %v507, %v506
        %v538 = vpack.c.b16 %v509, %v508
        %v539 = vpack.c.b16 %v511, %v510
        %v540 = vpack.c.b16 %v513, %v512
        %v541 = vpack.c.b16 %v515, %v514
        %v542 = vpack.c.b16 %v517, %v516
        %v543 = vpack.c.b16 %v519, %v518
        %v544 = vpack.c.b16 %v521, %v520
        %v545 = vpack.c.b16 %v523, %v522
        %v546 = vpack.c.b16 %v525, %v524
        %v547 = vpack.c.b16 %v527, %v526
        %v548 = vpack.c.b16 %v529, %v528
        %v549 = vpack.c.b16 %v531, %v530
        %v550 = vpack.c.b16 %v533, %v532
        %v551 = vpack.c.b16 %v535, %v534
        %568 = vmatpush.bf16.msra.mxu0 %v543
        %569 = vmatpush.bf16.msra.mxu0 %v542
        %570 = vmatpush.bf16.msra.mxu0 %v541
        %571 = vmatpush.bf16.msra.mxu0 %v540
        %572 = vmatpush.bf16.msra.mxu0 %v539
        %573 = vmatpush.bf16.msra.mxu0 %v538
        %574 = vmatpush.bf16.msra.mxu0 %v537
        %575 = vmatpush.bf16.msra.mxu0 %v536
        %576 = vmatmul.bf16.gmra.mxu0 %v440
        %v577 = vpop.f32.mrf.mxu0
        %v578 = vadd.f32 0.0, %v577
        %v579 = vpop.f32.mrf.mxu0
        %v580 = vadd.f32 0.0, %v579
        %581 = vmatmul.bf16.gmra.mxu0 %v442
        %v582 = vpop.f32.mrf.mxu0
        %v583 = vadd.f32 0.0, %v582
        %v584 = vpop.f32.mrf.mxu0
        %v585 = vadd.f32 0.0, %v584
        %586 = vmatmul.bf16.gmra.mxu0 %v444
        %v587 = vpop.f32.mrf.mxu0
        %v588 = vadd.f32 0.0, %v587
        %v589 = vpop.f32.mrf.mxu0
        %v590 = vadd.f32 0.0, %v589
        %591 = vmatmul.bf16.gmra.mxu0 %v446
        %v592 = vpop.f32.mrf.mxu0
        %v593 = vadd.f32 0.0, %v592
        %v594 = vpop.f32.mrf.mxu0
        %v595 = vadd.f32 0.0, %v594
        %596 = vmatmul.bf16.gmra.mxu0 %v448
        %v597 = vpop.f32.mrf.mxu0
        %v598 = vadd.f32 0.0, %v597
        %v599 = vpop.f32.mrf.mxu0
        %v600 = vadd.f32 0.0, %v599
        %601 = vmatmul.bf16.gmra.mxu0 %v450
        %v602 = vpop.f32.mrf.mxu0
        %v603 = vadd.f32 0.0, %v602
        %v604 = vpop.f32.mrf.mxu0
        %v605 = vadd.f32 0.0, %v604
        %606 = vmatmul.bf16.gmra.mxu0 %v452
        %v607 = vpop.f32.mrf.mxu0
        %v608 = vadd.f32 0.0, %v607
        %v609 = vpop.f32.mrf.mxu0
        %v610 = vadd.f32 0.0, %v609
        %611 = vmatmul.bf16.gmra.mxu0 %v454
        %v612 = vpop.f32.mrf.mxu0
        %v613 = vadd.f32 0.0, %v612
        %v614 = vpop.f32.mrf.mxu0
        %v615 = vadd.f32 0.0, %v614
        %616 = vdwg.mxu0
        %617 = vmatpush.bf16.msra.mxu0 %v551
        %618 = vmatpush.bf16.msra.mxu0 %v550
        %619 = vmatpush.bf16.msra.mxu0 %v549
        %620 = vmatpush.bf16.msra.mxu0 %v548
        %621 = vmatpush.bf16.msra.mxu0 %v547
        %622 = vmatpush.bf16.msra.mxu0 %v546
        %623 = vmatpush.bf16.msra.mxu0 %v545
        %624 = vmatpush.bf16.msra.mxu0 %v544
        %625 = vmatmul.bf16.gmra.mxu0 %v441
        %v626 = vpop.f32.mrf.mxu0
        %v627 = vadd.f32 %v578, %v626
        %v628 = vpop.f32.mrf.mxu0
        %v629 = vadd.f32 %v580, %v628
        %630 = vmatmul.bf16.gmra.mxu0 %v443
        %v631 = vpop.f32.mrf.mxu0
        %v632 = vadd.f32 %v583, %v631
        %v633 = vpop.f32.mrf.mxu0
        %v634 = vadd.f32 %v585, %v633
        %635 = vmatmul.bf16.gmra.mxu0 %v445
        %v636 = vpop.f32.mrf.mxu0
        %v637 = vadd.f32 %v588, %v636
        %v638 = vpop.f32.mrf.mxu0
        %v639 = vadd.f32 %v590, %v638
        %640 = vmatmul.bf16.gmra.mxu0 %v447
        %v641 = vpop.f32.mrf.mxu0
        %v642 = vadd.f32 %v593, %v641
        %v643 = vpop.f32.mrf.mxu0
        %v644 = vadd.f32 %v595, %v643
        %645 = vmatmul.bf16.gmra.mxu0 %v449
        %v646 = vpop.f32.mrf.mxu0
        %v647 = vadd.f32 %v598, %v646
        %v648 = vpop.f32.mrf.mxu0
        %v649 = vadd.f32 %v600, %v648
        %650 = vmatmul.bf16.gmra.mxu0 %v451
        %v651 = vpop.f32.mrf.mxu0
        %v652 = vadd.f32 %v603, %v651
        %v653 = vpop.f32.mrf.mxu0
        %v654 = vadd.f32 %v605, %v653
        %655 = vmatmul.bf16.gmra.mxu0 %v453
        %v656 = vpop.f32.mrf.mxu0
        %v657 = vadd.f32 %v608, %v656
        %v658 = vpop.f32.mrf.mxu0
        %v659 = vadd.f32 %v610, %v658
        %660 = vmatmul.bf16.gmra.mxu0 %v455
        %v661 = vpop.f32.mrf.mxu0
        %v662 = vadd.f32 %v613, %v661
        %v663 = vpop.f32.mrf.mxu0
        %v664 = vadd.f32 %v615, %v663
        %665 = vdwg.mxu0
        %p666 = scmp.eq.s32.totalorder %s29, 0
        // Predicated region
        $region57: #{tpu_custom_call.1} parent=39 // pred_check
          %p667 = pneg %p666
        $region58: #{tpu_custom_call.1} parent=39 // pred_check_branch
          %669 = sbr.rel (%p667) target = $region60
        $region59: #{tpu_custom_call.1} parent=39 // pred_region
          %670 = vst [vmem:[%s334] sm:$0xff] %v627
          %671 = vst [vmem:[%s334 + $0x8] sm:$0xff] %v629
          %672 = vst [vmem:[%s334 + $0x10] sm:$0xff] %v632
          %673 = vst [vmem:[%s334 + $0x18] sm:$0xff] %v634
          %674 = vst [vmem:[%s334 + $0x20] sm:$0xff] %v637
          %675 = vst [vmem:[%s334 + $0x28] sm:$0xff] %v639
          %676 = vst [vmem:[%s334 + $0x30] sm:$0xff] %v642
          %677 = vst [vmem:[%s334 + $0x38] sm:$0xff] %v644
          %678 = vst [vmem:[%s334 + $0x40] sm:$0xff] %v647
          %679 = vst [vmem:[%s334 + $0x48] sm:$0xff] %v649
          %680 = vst [vmem:[%s334 + $0x50] sm:$0xff] %v652
          %681 = vst [vmem:[%s334 + $0x58] sm:$0xff] %v654
          %682 = vst [vmem:[%s334 + $0x60] sm:$0xff] %v657
          %683 = vst [vmem:[%s334 + $0x68] sm:$0xff] %v659
          %684 = vst [vmem:[%s334 + $0x70] sm:$0xff] %v662
          %685 = vst [vmem:[%s334 + $0x78] sm:$0xff] %v664
        $region60: #{tpu_custom_call.1} parent=39 // pred_fallthru
          _
        %p686 = scmp.gt.s32.totalorder %s29, 0
        // Predicated region
        $region61: #{tpu_custom_call.1} parent=39 // pred_check
          %p687 = pneg %p686
        $region62: #{tpu_custom_call.1} parent=39 // pred_check_branch
          %689 = sbr.rel (%p687) target = $region64
        $region63: #{tpu_custom_call.1} parent=39 // pred_region
          %v690 = vld [vmem:[%s334] sm:$0xff]
          %v691 = vld [vmem:[%s334 + $0x8] sm:$0xff]
          %v692 = vld [vmem:[%s334 + $0x10] sm:$0xff]
          %v693 = vld [vmem:[%s334 + $0x18] sm:$0xff]
          %v694 = vld [vmem:[%s334 + $0x20] sm:$0xff]
          %v695 = vld [vmem:[%s334 + $0x28] sm:$0xff]
          %v696 = vld [vmem:[%s334 + $0x30] sm:$0xff]
          %v697 = vld [vmem:[%s334 + $0x38] sm:$0xff]
          %v698 = vld [vmem:[%s334 + $0x40] sm:$0xff]
          %v699 = vld [vmem:[%s334 + $0x48] sm:$0xff]
          %v700 = vld [vmem:[%s334 + $0x50] sm:$0xff]
          %v701 = vld [vmem:[%s334 + $0x58] sm:$0xff]
          %v702 = vld [vmem:[%s334 + $0x60] sm:$0xff]
          %v703 = vld [vmem:[%s334 + $0x68] sm:$0xff]
          %v704 = vld [vmem:[%s334 + $0x70] sm:$0xff]
          %v705 = vld [vmem:[%s334 + $0x78] sm:$0xff]
          %v706 = vadd.f32 %v690, %v627
          %v707 = vadd.f32 %v691, %v629
          %v708 = vadd.f32 %v692, %v632
          %v709 = vadd.f32 %v693, %v634
          %v710 = vadd.f32 %v694, %v637
          %v711 = vadd.f32 %v695, %v639
          %v712 = vadd.f32 %v696, %v642
          %v713 = vadd.f32 %v697, %v644
          %v714 = vadd.f32 %v698, %v647
          %v715 = vadd.f32 %v699, %v649
          %v716 = vadd.f32 %v700, %v652
          %v717 = vadd.f32 %v701, %v654
          %v718 = vadd.f32 %v702, %v657
          %v719 = vadd.f32 %v703, %v659
          %v720 = vadd.f32 %v704, %v662
          %v721 = vadd.f32 %v705, %v664
          %722 = vst [vmem:[%s334] sm:$0xff] %v706
          %723 = vst [vmem:[%s334 + $0x8] sm:$0xff] %v707
          %724 = vst [vmem:[%s334 + $0x10] sm:$0xff] %v708
          %725 = vst [vmem:[%s334 + $0x18] sm:$0xff] %v709
          %726 = vst [vmem:[%s334 + $0x20] sm:$0xff] %v710
          %727 = vst [vmem:[%s334 + $0x28] sm:$0xff] %v711
          %728 = vst [vmem:[%s334 + $0x30] sm:$0xff] %v712
          %729 = vst [vmem:[%s334 + $0x38] sm:$0xff] %v713
          %730 = vst [vmem:[%s334 + $0x40] sm:$0xff] %v714
          %731 = vst [vmem:[%s334 + $0x48] sm:$0xff] %v715
          %732 = vst [vmem:[%s334 + $0x50] sm:$0xff] %v716
          %733 = vst [vmem:[%s334 + $0x58] sm:$0xff] %v717
          %734 = vst [vmem:[%s334 + $0x60] sm:$0xff] %v718
          %735 = vst [vmem:[%s334 + $0x68] sm:$0xff] %v719
          %736 = vst [vmem:[%s334 + $0x70] sm:$0xff] %v720
          %737 = vst [vmem:[%s334 + $0x78] sm:$0xff] %v721
        $region64: #{tpu_custom_call.1} parent=39 // pred_fallthru
          _
        // Predicated region
        $region65: #{tpu_custom_call.1} parent=39 // pred_check
          %p738 = pneg %p666
        $region66: #{tpu_custom_call.1} parent=39 // pred_check_branch
          %740 = sbr.rel (%p738) target = $region68
        $region67: #{tpu_custom_call.1} parent=39 // pred_region
          %s741 = sld [smem:[#allocation2]]
          %s742 = ssub.f32 1.0, %s741
          %v743 = vld [vmem:[%s334] sm:$0xff]
          %v744 = vld [vmem:[%s334 + $0x8] sm:$0xff]
          %v745 = vld [vmem:[%s334 + $0x10] sm:$0xff]
          %v746 = vld [vmem:[%s334 + $0x18] sm:$0xff]
          %v747 = vld [vmem:[%s334 + $0x20] sm:$0xff]
          %v748 = vld [vmem:[%s334 + $0x28] sm:$0xff]
          %v749 = vld [vmem:[%s334 + $0x30] sm:$0xff]
          %v750 = vld [vmem:[%s334 + $0x38] sm:$0xff]
          %v751 = vld [vmem:[%s334 + $0x40] sm:$0xff]
          %v752 = vld [vmem:[%s334 + $0x48] sm:$0xff]
          %v753 = vld [vmem:[%s334 + $0x50] sm:$0xff]
          %v754 = vld [vmem:[%s334 + $0x58] sm:$0xff]
          %v755 = vld [vmem:[%s334 + $0x60] sm:$0xff]
          %v756 = vld [vmem:[%s334 + $0x68] sm:$0xff]
          %v757 = vld [vmem:[%s334 + $0x70] sm:$0xff]
          %v758 = vld [vmem:[%s334 + $0x78] sm:$0xff]
          %v759 = vstv %s742
          %v760 = vmul.f32 %v759, %v743
          %v761 = vmul.f32 %v759, %v744
          %v762 = vmul.f32 %v759, %v745
          %v763 = vmul.f32 %v759, %v746
          %v764 = vmul.f32 %v759, %v747
          %v765 = vmul.f32 %v759, %v748
          %v766 = vmul.f32 %v759, %v749
          %v767 = vmul.f32 %v759, %v750
          %v768 = vmul.f32 %v759, %v751
          %v769 = vmul.f32 %v759, %v752
          %v770 = vmul.f32 %v759, %v753
          %v771 = vmul.f32 %v759, %v754
          %v772 = vmul.f32 %v759, %v755
          %v773 = vmul.f32 %v759, %v756
          %v774 = vmul.f32 %v759, %v757
          %v775 = vmul.f32 %v759, %v758
          %v776 = vld [vmem:[%s297] sm:$0xff]
          %v777 = vld [vmem:[%s297 + $0x8] sm:$0xff]
          %v778 = vld [vmem:[%s297 + $0x10] sm:$0xff]
          %v779 = vld [vmem:[%s297 + $0x18] sm:$0xff]
          %v780 = vld [vmem:[%s297 + $0x20] sm:$0xff]
          %v781 = vld [vmem:[%s297 + $0x28] sm:$0xff]
          %v782 = vld [vmem:[%s297 + $0x30] sm:$0xff]
          %v783 = vld [vmem:[%s297 + $0x38] sm:$0xff]
          %v784 = vld [vmem:[%s297 + $0x40] sm:$0xff]
          %v785 = vld [vmem:[%s297 + $0x48] sm:$0xff]
          %v786 = vld [vmem:[%s297 + $0x50] sm:$0xff]
          %v787 = vld [vmem:[%s297 + $0x58] sm:$0xff]
          %v788 = vld [vmem:[%s297 + $0x60] sm:$0xff]
          %v789 = vld [vmem:[%s297 + $0x68] sm:$0xff]
          %v790 = vld [vmem:[%s297 + $0x70] sm:$0xff]
          %v791 = vld [vmem:[%s297 + $0x78] sm:$0xff]
          %v792 = vstv %s741
          %v793 = vmul.f32 %v792, %v776
          %v794 = vmul.f32 %v792, %v777
          %v795 = vmul.f32 %v792, %v778
          %v796 = vmul.f32 %v792, %v779
          %v797 = vmul.f32 %v792, %v780
          %v798 = vmul.f32 %v792, %v781
          %v799 = vmul.f32 %v792, %v782
          %v800 = vmul.f32 %v792, %v783
          %v801 = vmul.f32 %v792, %v784
          %v802 = vmul.f32 %v792, %v785
          %v803 = vmul.f32 %v792, %v786
          %v804 = vmul.f32 %v792, %v787
          %v805 = vmul.f32 %v792, %v788
          %v806 = vmul.f32 %v792, %v789
          %v807 = vmul.f32 %v792, %v790
          %v808 = vmul.f32 %v792, %v791
          %v809 = vadd.f32 %v760, %v793
          %v810 = vadd.f32 %v761, %v794
          %v811 = vadd.f32 %v762, %v795
          %v812 = vadd.f32 %v763, %v796
          %v813 = vadd.f32 %v764, %v797
          %v814 = vadd.f32 %v765, %v798
          %v815 = vadd.f32 %v766, %v799
          %v816 = vadd.f32 %v767, %v800
          %v817 = vadd.f32 %v768, %v801
          %v818 = vadd.f32 %v769, %v802
          %v819 = vadd.f32 %v770, %v803
          %v820 = vadd.f32 %v771, %v804
          %v821 = vadd.f32 %v772, %v805
          %v822 = vadd.f32 %v773, %v806
          %v823 = vadd.f32 %v774, %v807
          %v824 = vadd.f32 %v775, %v808
          %v825 = vld [vmem:[#allocation9] sm:$0xff]
          %v826 = vld [vmem:[#allocation9 + $0x8] sm:$0xff]
          %v827 = vld [vmem:[#allocation9 + $0x10] sm:$0xff]
          %v828 = vld [vmem:[#allocation9 + $0x18] sm:$0xff]
          %v829 = vld [vmem:[#allocation9 + $0x20] sm:$0xff]
          %v830 = vld [vmem:[#allocation9 + $0x28] sm:$0xff]
          %v831 = vld [vmem:[#allocation9 + $0x30] sm:$0xff]
          %v832 = vld [vmem:[#allocation9 + $0x38] sm:$0xff]
          %v833 = vld [vmem:[#allocation9 + $0x40] sm:$0xff]
          %v834 = vld [vmem:[#allocation9 + $0x48] sm:$0xff]
          %v835 = vld [vmem:[#allocation9 + $0x50] sm:$0xff]
          %v836 = vld [vmem:[#allocation9 + $0x58] sm:$0xff]
          %v837 = vld [vmem:[#allocation9 + $0x60] sm:$0xff]
          %v838 = vld [vmem:[#allocation9 + $0x68] sm:$0xff]
          %v839 = vld [vmem:[#allocation9 + $0x70] sm:$0xff]
          %v840 = vld [vmem:[#allocation9 + $0x78] sm:$0xff]
          %841 = vmatpush.msra.mxu0 %v840
          %842 = vmatpush.msra.mxu0 %v839
          %843 = vmatpush.msra.mxu0 %v838
          %844 = vmatpush.msra.mxu0 %v837
          %845 = vmatpush.msra.mxu0 %v836
          %846 = vmatpush.msra.mxu0 %v835
          %847 = vmatpush.msra.mxu0 %v834
          %848 = vmatpush.msra.mxu0 %v833
          %849 = vmatpush.msra.mxu0 %v832
          %850 = vmatpush.msra.mxu0 %v831
          %851 = vmatpush.msra.mxu0 %v830
          %852 = vmatpush.msra.mxu0 %v829
          %853 = vmatpush.msra.mxu0 %v828
          %854 = vmatpush.msra.mxu0 %v827
          %855 = vmatpush.msra.mxu0 %v826
          %856 = vmatpush.msra.mxu0 %v825
          %857 = vmatmul.f32.gmra.mxu0 %v809
          %v858 = vpop.f32.mrf.mxu0
          %v859 = vadd.f32 0.0, %v858
          %860 = vmatmul.f32.gmra.mxu0 %v810
          %v861 = vpop.f32.mrf.mxu0
          %v862 = vadd.f32 0.0, %v861
          %863 = vmatmul.f32.gmra.mxu0 %v811
          %v864 = vpop.f32.mrf.mxu0
          %v865 = vadd.f32 0.0, %v864
          %866 = vmatmul.f32.gmra.mxu0 %v812
          %v867 = vpop.f32.mrf.mxu0
          %v868 = vadd.f32 0.0, %v867
          %869 = vmatmul.f32.gmra.mxu0 %v813
          %v870 = vpop.f32.mrf.mxu0
          %v871 = vadd.f32 0.0, %v870
          %872 = vmatmul.f32.gmra.mxu0 %v814
          %v873 = vpop.f32.mrf.mxu0
          %v874 = vadd.f32 0.0, %v873
          %875 = vmatmul.f32.gmra.mxu0 %v815
          %v876 = vpop.f32.mrf.mxu0
          %v877 = vadd.f32 0.0, %v876
          %878 = vmatmul.f32.gmra.mxu0 %v816
          %v879 = vpop.f32.mrf.mxu0
          %v880 = vadd.f32 0.0, %v879
          %881 = vmatmul.f32.gmra.mxu0 %v817
          %v882 = vpop.f32.mrf.mxu0
          %v883 = vadd.f32 0.0, %v882
          %884 = vmatmul.f32.gmra.mxu0 %v818
          %v885 = vpop.f32.mrf.mxu0
          %v886 = vadd.f32 0.0, %v885
          %887 = vmatmul.f32.gmra.mxu0 %v819
          %v888 = vpop.f32.mrf.mxu0
          %v889 = vadd.f32 0.0, %v888
          %890 = vmatmul.f32.gmra.mxu0 %v820
          %v891 = vpop.f32.mrf.mxu0
          %v892 = vadd.f32 0.0, %v891
          %893 = vmatmul.f32.gmra.mxu0 %v821
          %v894 = vpop.f32.mrf.mxu0
          %v895 = vadd.f32 0.0, %v894
          %896 = vmatmul.f32.gmra.mxu0 %v822
          %v897 = vpop.f32.mrf.mxu0
          %v898 = vadd.f32 0.0, %v897
          %899 = vmatmul.f32.gmra.mxu0 %v823
          %v900 = vpop.f32.mrf.mxu0
          %v901 = vadd.f32 0.0, %v900
          %902 = vmatmul.f32.gmra.mxu0 %v824
          %v903 = vpop.f32.mrf.mxu0
          %v904 = vadd.f32 0.0, %v903
          %905 = vdwg.mxu0
          %906 = vst [vmem:[%s334] sm:$0xff] %v859
          %907 = vst [vmem:[%s334 + $0x8] sm:$0xff] %v862
          %908 = vst [vmem:[%s334 + $0x10] sm:$0xff] %v865
          %909 = vst [vmem:[%s334 + $0x18] sm:$0xff] %v868
          %910 = vst [vmem:[%s334 + $0x20] sm:$0xff] %v871
          %911 = vst [vmem:[%s334 + $0x28] sm:$0xff] %v874
          %912 = vst [vmem:[%s334 + $0x30] sm:$0xff] %v877
          %913 = vst [vmem:[%s334 + $0x38] sm:$0xff] %v880
          %914 = vst [vmem:[%s334 + $0x40] sm:$0xff] %v883
          %915 = vst [vmem:[%s334 + $0x48] sm:$0xff] %v886
          %916 = vst [vmem:[%s334 + $0x50] sm:$0xff] %v889
          %917 = vst [vmem:[%s334 + $0x58] sm:$0xff] %v892
          %918 = vst [vmem:[%s334 + $0x60] sm:$0xff] %v895
          %919 = vst [vmem:[%s334 + $0x68] sm:$0xff] %v898
          %920 = vst [vmem:[%s334 + $0x70] sm:$0xff] %v901
          %921 = vst [vmem:[%s334 + $0x78] sm:$0xff] %v904
        $region68: #{tpu_custom_call.1} parent=39 // pred_fallthru
          _
        %s922 = sand.u32 %s161, 1
        %s923 = scalar_lea.sflag [#allocation5], %s922
        %s924 = sand.u32 %s161, 1
        %s925 = smul.addr %s924, 128
        %s926 = scalar_lea.vmem [#allocation10], %s925
        // Predicated region
        $region69: #{tpu_custom_call.1} parent=39 // pred_check
          %p927 = pneg %p171
        $region70: #{tpu_custom_call.1} parent=39 // pred_check_branch
          %929 = sbr.rel (%p927) target = $region72
        $region71: #{tpu_custom_call.1} parent=39 // pred_region
          %s930 = smul.u32 16, %s28
          %932 = vsyncadd %s923, 0
          %s933 = smul.addr %s930, 8
          %s934 = scalar_lea.hbm %s5, %s933
          %s935 = sshll.u32 %s926, 4
          %s936 = int_to_ptr.vmem [resolvable:$true] %s935
          %s937 = sshll.u32 %s934, 4
          %s938 = int_to_ptr.hbm [resolvable:$true] %s937
          %943 = dma.vmem_to_hbm [thread:$0]  %s936, 2048, %s938, %s923, 128, 128, 8
        $region72: #{tpu_custom_call.1} parent=39 // pred_fallthru
          _
      $region40: #{tpu_custom_call.1} parent=5 // pred_fallthru
        _
      %p944 = scmp.le.s32.totalorder 2, %s19
      // Predicated region
      $region73: #{tpu_custom_call.1} parent=5 // pred_check
        %p945 = pneg %p944
      $region74: #{tpu_custom_call.1} parent=5 // pred_check_branch
        %947 = sbr.rel (%p945) target = $region76
      $region75: #{tpu_custom_call.1} parent=5 // pred_region
        %s948 = ssub.s32 %s19, 2
        // Predicated region
        $region77: #{tpu_custom_call.1} parent=75 // pred_check
          %p949 = pneg %p177
        $region78: #{tpu_custom_call.1} parent=75 // pred_check_branch
          %951 = sbr.rel (%p949) target = $region80
        $region79: #{tpu_custom_call.1} parent=75 // pred_region
          %s952 = sand.u32 %s162, 1
          %s953 = scalar_lea.sflag [#allocation5], %s952
          %s954 = sand.u32 %s162, 1
          %s955 = smul.addr %s954, 128
          %s956 = scalar_lea.vmem [#allocation10], %s955
          %958 = dma.done %s953, 2048
        $region80: #{tpu_custom_call.1} parent=75 // pred_fallthru
          _
      $region76: #{tpu_custom_call.1} parent=5 // pred_fallthru
        _
    $region6: #{tpu_custom_call.1} parent=1 // loop_footer
      %s23 = sadd.s32 1, %s19
    $region7: #{tpu_custom_call.1} parent=1 // loop_footer_branch
      %18 = sbr.rel target = $region3
    $region8: #{tpu_custom_call.1} parent=1 // loop_exit
      _
    %959 = vsyncpa [#allocation4], 1
    %s960 = scalar_lea.sflag [#allocation4], 1
    %961 = vsyncpa %s960, 1
    %962 = vsyncpa [#allocation7], 1
    %963 = vsyncpa [#allocation5], 1
    %s964 = scalar_lea.sflag [#allocation5], 1
    %965 = vsyncpa %s964, 1

</llo_original>
